<compile_context>
chip_gen: v6e
topology: v6e:2x2x1
jax: 0.10.0
libtpu: 0.0.40
codegen_flags: <defaults>
</compile_context>

<pallas_src>
import math
import jax
import jax.numpy as jnp
from jax import lax
from jax.experimental import pallas as pl
from jax.experimental.pallas import tpu as pltpu


def _ssa_kernel(gamma_ref, w_ref, x_ref, o_ref):
    # gamma_ref: SMEM (1,) f32
    # w_ref:     VMEM (Cp, Cp)        spectral-normalized 1x1-conv weight
    # x_ref/o_ref: VMEM (Bt, Cp, Np)  a tile of Bt batch items
    xb = x_ref[...]                                               # (Bt, Cp, Np)
    w = w_ref[...]                                                # (Cp, Cp)

    # xxT[b] = x[b] @ x[b]^T : contract the lane (N) axis of both operands
    # directly on the MXU; no explicit transpose is built.
    xxT = lax.dot_general(
        xb, xb,
        dimension_numbers=(((2,), (2,)), ((0,), (0,))),
        preferred_element_type=jnp.float32)                       # (Bt, Cp, Cp)

    # Reassociated: m = gamma * (xxT @ W) (small C x C matmul).
    m = lax.dot_general(
        xxT, w,
        dimension_numbers=(((2,), (0,)), ((), ())),
        preferred_element_type=jnp.float32)                       # (Bt, Cp, Cp)
    m = gamma_ref[0] * m

    # o = m @ x ; epilogue is just one vector add.
    o = lax.dot_general(
        m.astype(xb.dtype), xb,
        dimension_numbers=(((2,), (1,)), ((0,), (0,))),
        preferred_element_type=jnp.float32)                       # (Bt, Cp, Np)

    o_ref[...] = (o + xb.astype(jnp.float32)).astype(o_ref.dtype)


def _round_up(x, m):
    return (x + m - 1) // m * m


def _pick_batch_tile(B, cp, npad, itemsize, budget_bytes=24 << 20):
    """Largest divisor of B whose double-buffered blocks + intermediates fit."""
    def est(bt):
        block = bt * cp * npad * itemsize            # one (Bt, Cp, Np) tile
        inter = bt * (2 * cp * cp + cp * npad) * 4   # f32 intermediates
        return 4 * block + cp * cp * itemsize + inter  # 2x dbl-buffered in+out
    for bt in range(B, 0, -1):
        if B % bt == 0 and est(bt) <= budget_bytes:
            return bt
    return 1


def simple_self_attention(x, weight, gamma, sym=False):
    """x: (B, C, H, W); weight: (C, C) spectral-normalized; gamma: (1,) f32."""
    B, C, H, W = x.shape
    N = H * W
    itemsize = jnp.dtype(x.dtype).itemsize

    if sym:
        # Module's sym branch: symmetrize the (C,C) 1x1-conv weight.
        weight = (weight + weight.T) * 0.5

    # Pad channels to a multiple of 8 (f32 sublane) and spatial to a multiple
    # of 128 (lane). Zero padding is inert: padded rows/cols of xxT, m, and the
    # output stay exactly zero, and are sliced away afterwards.
    cp = _round_up(max(C, 8), 8)
    npad = _round_up(max(N, 128), 128)

    x_flat = x.reshape(B, C, N)
    if (cp, npad) != (C, N):
        x_flat = jnp.pad(x_flat, ((0, 0), (0, cp - C), (0, npad - N)))
    w_pad = weight if cp == C else jnp.pad(weight, ((0, cp - C), (0, cp - C)))
    gamma = gamma.astype(jnp.float32)

    bt = _pick_batch_tile(B, cp, npad, itemsize)

    cost = pl.CostEstimate(
        flops=2 * B * (2 * cp * cp * npad + cp ** 3),
        transcendentals=0,
        bytes_accessed=2 * B * cp * npad * itemsize + cp * cp * itemsize,
    )

    out = pl.pallas_call(
        _ssa_kernel,
        out_shape=jax.ShapeDtypeStruct((B, cp, npad), x.dtype),
        grid=(B // bt,),
        in_specs=[
            pl.BlockSpec(memory_space=pltpu.MemorySpace.SMEM),      # gamma scalar
            pl.BlockSpec((cp, cp), lambda b: (0, 0)),               # conv weight (full)
            pl.BlockSpec((bt, cp, npad), lambda b: (b, 0, 0)),      # x batch tile
        ],
        out_specs=pl.BlockSpec((bt, cp, npad), lambda b: (b, 0, 0)),
        compiler_params=pltpu.CompilerParams(
            dimension_semantics=("parallel",),
            vmem_limit_bytes=48 * 1024 * 1024),
        cost_estimate=cost,
    )(gamma, w_pad, x_flat)

    return out[:, :C, :N].reshape(B, C, H, W)


def spectral_normalize(w, n_iters=30):
    # Mimics torch.nn.utils.spectral_norm: divide by the top singular value
    # (estimated with deterministic power iteration instead of random-u init).
    u = jnp.ones((w.shape[0],), w.dtype) / math.sqrt(w.shape[0])
    for _ in range(n_iters):
        v = w.T @ u
        v = v / (jnp.linalg.norm(v) + 1e-12)
        u = w @ v
        u = u / (jnp.linalg.norm(u) + 1e-12)
    sigma = u @ (w @ v)
    return w / sigma


def reference_forward(x, weight, gamma):
    B, C, H, W = x.shape
    xf = x.reshape(B, C, H * W)
    convx = jnp.einsum('oi,bin->bon', weight, xf)
    xxT = jnp.einsum('bin,bjn->bij', xf, xf)
    o = jnp.einsum('bij,bjn->bin', xxT, convx)
    return (gamma[0] * o + xf).reshape(B, C, H, W)


if __name__ == "__main__":
    key = jax.random.PRNGKey(0)
    kx, kw = jax.random.split(key)

    B, C, H, W = 2, 4, 16, 16
    x = jax.random.normal(kx, (B, C, H, W), dtype=jnp.float32)

    # conv1d(n_in, n_in, ks=1, bias=False): kaiming_normal_ init, spectral norm.
    ks = 1
    fan_in = C * ks
    w_raw = jax.random.normal(kw, (C, C), dtype=jnp.float32) * math.sqrt(2.0 / fan_in)
    w_sn = spectral_normalize(w_raw)

    # gamma parameter has shape (1,); module inits it to 0.0 — nonzero here so
    # the attention path is actually exercised numerically.
    gamma = jnp.array([0.25], dtype=jnp.float32)

    out = simple_self_attention(x, w_sn, gamma)
    out = jax.block_until_ready(out)

    ref = reference_forward(x, w_sn, gamma)
    assert out.shape == (B, C, H, W)
    # Reassociated product changes rounding order slightly; keep a tight but
    # reassociation-tolerant threshold.
    assert jnp.allclose(out, ref, atol=1e-3, rtol=1e-3), "mismatch vs reference"

    print("KERNEL_OK")
</pallas_src>

<mosaic_0001>
module attributes {stable_mosaic.version = 11 : i64} {
  func.func @_ssa_kernel(%arg0: i32, %arg1: memref<1xf32, #tpu.memory_space<smem>>, %arg2: memref<8x8xf32, #tpu.memory_space<vmem>>, %arg3: memref<2x8x256xf32, #tpu.memory_space<vmem>>, %arg4: memref<2x8x256xf32, #tpu.memory_space<vmem>>) attributes {dimension_semantics = [#tpu.dimension_semantics<parallel>], iteration_bounds = array<i64: 1>, scalar_prefetch = 0 : i64, scratch_operands = 0 : i64, tpu.core_type = #tpu.core_type<tc>, window_params = [{transform_indices = @transform_0, window_bounds = array<i64: 1>}, {pipeline_mode = #tpu.pipeline_mode<synchronous>, transform_indices = @transform_1, window_bounds = array<i64: 8, 8>}, {transform_indices = @transform_2, window_bounds = array<i64: 2, 8, 256>}, {transform_indices = @transform_3, window_bounds = array<i64: 2, 8, 256>}]} {
    %c0 = arith.constant 0 : index
    %c0_0 = arith.constant 0 : index
    %c0_1 = arith.constant 0 : index
    %0 = vector.load %arg3[%c0, %c0_0, %c0_1] : memref<2x8x256xf32, #tpu.memory_space<vmem>>, vector<2x8x256xf32>
    %c0_2 = arith.constant 0 : index
    %c0_3 = arith.constant 0 : index
    %1 = vector.load %arg2[%c0_2, %c0_3] : memref<8x8xf32, #tpu.memory_space<vmem>>, vector<8x8xf32>
    %cst = arith.constant dense<0.000000e+00> : vector<2x8x8xf32>
    %2 = tpu.matmul %0, %0, %cst {dimension_numbers = #tpu.dot_dimension_numbers<[2], [2], [1], [1], [0, 0, 0, 1, 1, 1], [0], [0]>} : vector<2x8x256xf32>, vector<2x8x256xf32>, vector<2x8x8xf32> -> vector<2x8x8xf32>
    %cst_4 = arith.constant dense<0.000000e+00> : vector<2x8x8xf32>
    %3 = tpu.matmul %2, %1, %cst_4 {dimension_numbers = #tpu.dot_dimension_numbers<[2], [0], [0, 1], [1], [0, 0, 0, 1, 1, 1], [], []>} : vector<2x8x8xf32>, vector<8x8xf32>, vector<2x8x8xf32> -> vector<2x8x8xf32>
    %c0_5 = arith.constant 0 : index
    %4 = memref.load %arg1[%c0_5] : memref<1xf32, #tpu.memory_space<smem>>
    %5 = vector.broadcast %4 : f32 to vector<2x8x8xf32>
    %6 = arith.mulf %5, %3 : vector<2x8x8xf32>
    %cst_6 = arith.constant dense<0.000000e+00> : vector<2x8x256xf32>
    %7 = tpu.matmul %6, %0, %cst_6 {dimension_numbers = #tpu.dot_dimension_numbers<[2], [1], [1], [2], [0, 0, 0, 1, 1, 2], [0], [0]>} : vector<2x8x8xf32>, vector<2x8x256xf32>, vector<2x8x256xf32> -> vector<2x8x256xf32>
    %8 = arith.addf %7, %0 : vector<2x8x256xf32>
    %c0_7 = arith.constant 0 : index
    %c0_8 = arith.constant 0 : index
    %c0_9 = arith.constant 0 : index
    %9 = vector.load %arg4[%c0_7, %c0_8, %c0_9] : memref<2x8x256xf32, #tpu.memory_space<vmem>>, vector<2x8x256xf32>
    tpu.vector_store %arg4[%c0_7, %c0_8, %c0_9], %8 {strides = array<i32>} : memref<2x8x256xf32, #tpu.memory_space<vmem>>, vector<2x8x256xf32>,
    return
  }
  func.func @transform_0(%arg0: i32) -> i32 {
    %c0_i32 = arith.constant 0 : i32
    %c0_i32_0 = arith.constant 0 : i32
    return %c0_i32 : i32
  }
  func.func @transform_1(%arg0: i32) -> (i32, i32) {
    %c0_i32 = arith.constant 0 : i32
    %c0_i32_0 = arith.constant 0 : i32
    %c0_i32_1 = arith.constant 0 : i32
    return %c0_i32, %c0_i32_0 : i32, i32
  }
  func.func @transform_2(%arg0: i32) -> (i32, i32, i32) {
    %c0_i32 = arith.constant 0 : i32
    %c0_i32_0 = arith.constant 0 : i32
    %c0_i32_1 = arith.constant 0 : i32
    return %arg0, %c0_i32, %c0_i32_0 : i32, i32, i32
  }
  func.func @transform_3(%arg0: i32) -> (i32, i32, i32) {
    %c0_i32 = arith.constant 0 : i32
    %c0_i32_0 = arith.constant 0 : i32
    %c0_i32_1 = arith.constant 0 : i32
    return %arg0, %c0_i32, %c0_i32_0 : i32, i32, i32
  }
}

</mosaic_0001>

<llo_original>
// kernel: tpu_custom_call.1
$region0: #{tpu_custom_call.1}
  #allocation0 [shape = 'u32[]', space=smem, size = 0x4, offset = 0x4, fixed_abs, tag = 'smem constant byte address 0x4 - core index']
  #allocation1 [shape = 'u32[144,128]{1,0:T(1,128)}', space=vmem, size = 0x12000, scoped, tag = 'internal scratch']
  #allocation2 [shape = 'f32[1]{0:T(128)S(6)}', space=smem, size = 0x200, scoped, tag = 'scoped memory for tpu_custom_call.1']
  %s0 = inlined_call_operand.<no memory space> [shape: f32[1], index: 0, kind: input, shape index: {}]
  %s1 = inlined_call_operand.hbm [shape: f32[8,8], index: 1, kind: input, shape index: {}]
  %s2 = inlined_call_operand.hbm [shape: f32[2,8,256], index: 2, kind: input, shape index: {}]
  %s3 = inlined_call_operand.hbm [shape: f32[2,8,256], index: 3, kind: output, shape index: {}]
  %s4 = sld [smem:[#allocation0]]
  $region30: #{tpu_custom_call.1} parent=0
    _
  %s6 = ssub.s32 1, %s4
  %s7 = scalar_select 0, %s6, %s4
  %8 = sst [smem:[#allocation2]] %s0
  $region1: #{tpu_custom_call.1} parent=0
    #allocation3 [shape = 'u8[4096]{0}', space=vmem, size = 0x1000, scoped, tag = 'input window, operand 1, single buffered']
    #allocation4 [shape = 's32[1]{0}', space=sflag, size = 0x4, scoped, tag = 'scoped memory for tpu_custom_call.1']
    #allocation5 [shape = 's32[1]{0}', space=sflag, size = 0x4, scoped, tag = 'scoped memory for tpu_custom_call.1']
    #allocation6 [shape = 'u8[16384]{0}', space=vmem, size = 0x4000, scoped, tag = 'input window, operand 2, single buffered']
    #allocation7 [shape = 's32[1]{0}', space=sflag, size = 0x4, scoped, tag = 'scoped memory for tpu_custom_call.1']
    #allocation8 [shape = 'u8[16384]{0}', space=vmem, size = 0x4000, scoped, tag = 'output window, operand 0, single buffered']
    %9 = vsyncpa [#allocation4], 0
    %10 = vsyncpa [#allocation7], 0
    %11 = vsyncpa [#allocation5], 0
    // Predicated region
    $region2: #{tpu_custom_call.1} parent=1 // pred_check
      _
    $region3: #{tpu_custom_call.1} parent=1 // pred_check_branch
      %13 = sbr.rel (0) target = $region5
    $region4: #{tpu_custom_call.1} parent=1 // pred_region
      _
    $region5: #{tpu_custom_call.1} parent=1 // pred_fallthru
      _
    // Predicated region
    $region6: #{tpu_custom_call.1} parent=1 // pred_check
      _
    $region7: #{tpu_custom_call.1} parent=1 // pred_check_branch
      %15 = sbr.rel (0) target = $region9
    $region8: #{tpu_custom_call.1} parent=1 // pred_region
      %s17 = ssub.s32 128, 128
      %18 = vsyncadd [#allocation4], %s17
      %s20 = sshll.u32 [#allocation3], 4
      %s21 = int_to_ptr.vmem [resolvable:$true] %s20
      %23 = dma.hbm_to_vmem [thread:$0]  %s1, 128, %s21, [#allocation4]
    $region9: #{tpu_custom_call.1} parent=1 // pred_fallthru
      _
    // Predicated region
    $region10: #{tpu_custom_call.1} parent=1 // pred_check
      _
    $region11: #{tpu_custom_call.1} parent=1 // pred_check_branch
      %25 = sbr.rel (0) target = $region13
    $region12: #{tpu_custom_call.1} parent=1 // pred_region
      %s27 = ssub.s32 512, 512
      %28 = vsyncadd [#allocation7], %s27
      %s29 = sshll.u32 [#allocation6], 4
      %s30 = int_to_ptr.vmem [resolvable:$true] %s29
      %35 = dma.hbm_to_vmem [thread:$0]  %s2, 512, %s30, [#allocation7], 256, 256, 16
    $region13: #{tpu_custom_call.1} parent=1 // pred_fallthru
      _
    // Predicated region
    $region14: #{tpu_custom_call.1} parent=1 // pred_check
      _
    $region15: #{tpu_custom_call.1} parent=1 // pred_check_branch
      %37 = sbr.rel (0) target = $region17
    $region16: #{tpu_custom_call.1} parent=1 // pred_region
      %38 = dma.done [#allocation4], 128
    $region17: #{tpu_custom_call.1} parent=1 // pred_fallthru
      _
    // Predicated region
    $region18: #{tpu_custom_call.1} parent=1 // pred_check
      _
    $region19: #{tpu_custom_call.1} parent=1 // pred_check_branch
      %40 = sbr.rel (0) target = $region21
    $region20: #{tpu_custom_call.1} parent=1 // pred_region
      %41 = dma.done [#allocation7], 512
    $region21: #{tpu_custom_call.1} parent=1 // pred_fallthru
      _
    %v42 = vld [vmem:[#allocation6] sm:$0xff]
    %v43 = vld [vmem:[#allocation6 + $0x8] sm:$0xff]
    %v44 = vld [vmem:[#allocation6 + $0x10] sm:$0xff]
    %v45 = vld [vmem:[#allocation6 + $0x18] sm:$0xff]
    %v46 = vld [vmem:[#allocation3] sm:$0xff]
    %47 = vmatprep.subr.mxu0 0.0
    %48 = vmatpush1.xpose.msra.mxu0 0.0
    %49 = vmatprep.subr.mxu0 0.0
    %50 = vmatpush1.xpose.msra.mxu0 0.0
    %51 = vmatprep.subr.mxu0 0.0
    %52 = vmatpush1.xpose.msra.mxu0 0.0
    %53 = vmatprep.subr.mxu0 0.0
    %54 = vmatpush1.xpose.msra.mxu0 0.0
    %55 = vmatprep.subr.mxu0 0.0
    %56 = vmatpush1.xpose.msra.mxu0 0.0
    %57 = vmatprep.subr.mxu0 0.0
    %58 = vmatpush1.xpose.msra.mxu0 0.0
    %59 = vmatprep.subr.mxu0 0.0
    %60 = vmatpush1.xpose.msra.mxu0 0.0
    %61 = vmatprep.subr.mxu0 0.0
    %62 = vmatpush1.xpose.msra.mxu0 0.0
    %63 = vmatprep.subr.mxu0 0.0
    %64 = vmatpush1.xpose.msra.mxu0 0.0
    %65 = vmatprep.subr.mxu0 0.0
    %66 = vmatpush1.xpose.msra.mxu0 0.0
    %67 = vmatprep.subr.mxu0 0.0
    %68 = vmatpush1.xpose.msra.mxu0 0.0
    %69 = vmatprep.subr.mxu0 0.0
    %70 = vmatpush1.xpose.msra.mxu0 0.0
    %71 = vmatprep.subr.mxu0 0.0
    %72 = vmatpush1.xpose.msra.mxu0 0.0
    %73 = vmatprep.subr.mxu0 0.0
    %74 = vmatpush1.xpose.msra.mxu0 0.0
    %75 = vmatprep.subr.mxu0 0.0
    %76 = vmatpush1.xpose.msra.mxu0 0.0
    %77 = vmatprep.subr.mxu0 %v43
    %78 = vmatpush1.xpose.msra.mxu0 %v42
    %79 = vmatprep.subr.mxu0 0.0
    %80 = vmatpush2.xpose.msra.mxu0 0.0
    %81 = vmatprep.subr.mxu0 0.0
    %82 = vmatpush2.xpose.msra.mxu0 0.0
    %83 = vmatprep.subr.mxu0 0.0
    %84 = vmatpush2.xpose.msra.mxu0 0.0
    %85 = vmatprep.subr.mxu0 0.0
    %86 = vmatpush2.xpose.msra.mxu0 0.0
    %87 = vmatprep.subr.mxu0 0.0
    %88 = vmatpush2.xpose.msra.mxu0 0.0
    %89 = vmatprep.subr.mxu0 0.0
    %90 = vmatpush2.xpose.msra.mxu0 0.0
    %91 = vmatprep.subr.mxu0 0.0
    %92 = vmatpush2.xpose.msra.mxu0 0.0
    %93 = vmatprep.subr.mxu0 0.0
    %94 = vmatpush2.xpose.msra.mxu0 0.0
    %95 = vmatprep.subr.mxu0 0.0
    %96 = vmatpush2.xpose.msra.mxu0 0.0
    %97 = vmatprep.subr.mxu0 0.0
    %98 = vmatpush2.xpose.msra.mxu0 0.0
    %99 = vmatprep.subr.mxu0 0.0
    %100 = vmatpush2.xpose.msra.mxu0 0.0
    %101 = vmatprep.subr.mxu0 0.0
    %102 = vmatpush2.xpose.msra.mxu0 0.0
    %103 = vmatprep.subr.mxu0 0.0
    %104 = vmatpush2.xpose.msra.mxu0 0.0
    %105 = vmatprep.subr.mxu0 0.0
    %106 = vmatpush2.xpose.msra.mxu0 0.0
    %107 = vmatprep.subr.mxu0 0.0
    %108 = vmatpush2.xpose.msra.mxu0 0.0
    %109 = vmatprep.subr.mxu0 0.0
    %110 = vmatpush2.xpose.msra.mxu0 0.0
    %111 = vmatprep.mubr.f32.mxu0 %v43
    %112 = vmatmul.mubr.f32.gmra.mxu0 %v42
    %v113 = vpop.f32.mrf.mxu0
    %v114 = vadd.f32 0.0, %v113
    %v115 = vpop.f32.mrf.mxu0
    %116 = vdwg.mxu0
    %117 = vmatprep.subr.mxu0 0.0
    %118 = vmatpush1.xpose.msra.mxu0 0.0
    %119 = vmatprep.subr.mxu0 0.0
    %120 = vmatpush1.xpose.msra.mxu0 0.0
    %121 = vmatprep.subr.mxu0 0.0
    %122 = vmatpush1.xpose.msra.mxu0 0.0
    %123 = vmatprep.subr.mxu0 0.0
    %124 = vmatpush1.xpose.msra.mxu0 0.0
    %125 = vmatprep.subr.mxu0 0.0
    %126 = vmatpush1.xpose.msra.mxu0 0.0
    %127 = vmatprep.subr.mxu0 0.0
    %128 = vmatpush1.xpose.msra.mxu0 0.0
    %129 = vmatprep.subr.mxu0 0.0
    %130 = vmatpush1.xpose.msra.mxu0 0.0
    %131 = vmatprep.subr.mxu0 0.0
    %132 = vmatpush1.xpose.msra.mxu0 0.0
    %133 = vmatprep.subr.mxu0 0.0
    %134 = vmatpush1.xpose.msra.mxu0 0.0
    %135 = vmatprep.subr.mxu0 0.0
    %136 = vmatpush1.xpose.msra.mxu0 0.0
    %137 = vmatprep.subr.mxu0 0.0
    %138 = vmatpush1.xpose.msra.mxu0 0.0
    %139 = vmatprep.subr.mxu0 0.0
    %140 = vmatpush1.xpose.msra.mxu0 0.0
    %141 = vmatprep.subr.mxu0 0.0
    %142 = vmatpush1.xpose.msra.mxu0 0.0
    %143 = vmatprep.subr.mxu0 0.0
    %144 = vmatpush1.xpose.msra.mxu0 0.0
    %145 = vmatprep.subr.mxu0 0.0
    %146 = vmatpush1.xpose.msra.mxu0 0.0
    %147 = vmatprep.subr.mxu0 %v45
    %148 = vmatpush1.xpose.msra.mxu0 %v44
    %149 = vmatprep.subr.mxu0 0.0
    %150 = vmatpush2.xpose.msra.mxu0 0.0
    %151 = vmatprep.subr.mxu0 0.0
    %152 = vmatpush2.xpose.msra.mxu0 0.0
    %153 = vmatprep.subr.mxu0 0.0
    %154 = vmatpush2.xpose.msra.mxu0 0.0
    %155 = vmatprep.subr.mxu0 0.0
    %156 = vmatpush2.xpose.msra.mxu0 0.0
    %157 = vmatprep.subr.mxu0 0.0
    %158 = vmatpush2.xpose.msra.mxu0 0.0
    %159 = vmatprep.subr.mxu0 0.0
    %160 = vmatpush2.xpose.msra.mxu0 0.0
    %161 = vmatprep.subr.mxu0 0.0
    %162 = vmatpush2.xpose.msra.mxu0 0.0
    %163 = vmatprep.subr.mxu0 0.0
    %164 = vmatpush2.xpose.msra.mxu0 0.0
    %165 = vmatprep.subr.mxu0 0.0
    %166 = vmatpush2.xpose.msra.mxu0 0.0
    %167 = vmatprep.subr.mxu0 0.0
    %168 = vmatpush2.xpose.msra.mxu0 0.0
    %169 = vmatprep.subr.mxu0 0.0
    %170 = vmatpush2.xpose.msra.mxu0 0.0
    %171 = vmatprep.subr.mxu0 0.0
    %172 = vmatpush2.xpose.msra.mxu0 0.0
    %173 = vmatprep.subr.mxu0 0.0
    %174 = vmatpush2.xpose.msra.mxu0 0.0
    %175 = vmatprep.subr.mxu0 0.0
    %176 = vmatpush2.xpose.msra.mxu0 0.0
    %177 = vmatprep.subr.mxu0 0.0
    %178 = vmatpush2.xpose.msra.mxu0 0.0
    %179 = vmatprep.subr.mxu0 0.0
    %180 = vmatpush2.xpose.msra.mxu0 0.0
    %181 = vmatprep.mubr.f32.mxu0 %v45
    %182 = vmatmul.mubr.f32.gmra.mxu0 %v44
    %v183 = vpop.f32.mrf.mxu0
    %v184 = vadd.f32 0.0, %v183
    %v185 = vpop.f32.mrf.mxu0
    %186 = vdwg.mxu0
    %vm187 = vcmask 64512
    %v189 = vsel %vm187, %v114, 0
    %v192 = vsel %vm187, %v184, 0
    %194 = vmatprep.subr.mxu0 0.0
    %195 = vmatpush1.msra.mxu0 0.0
    %196 = vmatprep.subr.mxu0 0.0
    %197 = vmatpush1.msra.mxu0 0.0
    %198 = vmatprep.subr.mxu0 0.0
    %199 = vmatpush1.msra.mxu0 0.0
    %200 = vmatprep.subr.mxu0 0.0
    %201 = vmatpush1.msra.mxu0 0.0
    %202 = vmatprep.subr.mxu0 0.0
    %203 = vmatpush1.msra.mxu0 0.0
    %204 = vmatprep.subr.mxu0 0.0
    %205 = vmatpush1.msra.mxu0 0.0
    %206 = vmatprep.subr.mxu0 0.0
    %207 = vmatpush1.msra.mxu0 0.0
    %208 = vmatprep.subr.mxu0 0.0
    %209 = vmatpush1.msra.mxu0 0.0
    %210 = vmatprep.subr.mxu0 0.0
    %211 = vmatpush1.msra.mxu0 0.0
    %212 = vmatprep.subr.mxu0 0.0
    %213 = vmatpush1.msra.mxu0 0.0
    %214 = vmatprep.subr.mxu0 0.0
    %215 = vmatpush1.msra.mxu0 0.0
    %216 = vmatprep.subr.mxu0 0.0
    %217 = vmatpush1.msra.mxu0 0.0
    %218 = vmatprep.subr.mxu0 0.0
    %219 = vmatpush1.msra.mxu0 0.0
    %220 = vmatprep.subr.mxu0 0.0
    %221 = vmatpush1.msra.mxu0 0.0
    %222 = vmatprep.subr.mxu0 0.0
    %223 = vmatpush1.msra.mxu0 0.0
    %224 = vmatprep.subr.mxu0 0.0
    %225 = vmatpush1.msra.mxu0 %v46
    %226 = vmatprep.subr.mxu0 0.0
    %227 = vmatpush2.msra.mxu0 0.0
    %228 = vmatprep.subr.mxu0 0.0
    %229 = vmatpush2.msra.mxu0 0.0
    %230 = vmatprep.subr.mxu0 0.0
    %231 = vmatpush2.msra.mxu0 0.0
    %232 = vmatprep.subr.mxu0 0.0
    %233 = vmatpush2.msra.mxu0 0.0
    %234 = vmatprep.subr.mxu0 0.0
    %235 = vmatpush2.msra.mxu0 0.0
    %236 = vmatprep.subr.mxu0 0.0
    %237 = vmatpush2.msra.mxu0 0.0
    %238 = vmatprep.subr.mxu0 0.0
    %239 = vmatpush2.msra.mxu0 0.0
    %240 = vmatprep.subr.mxu0 0.0
    %241 = vmatpush2.msra.mxu0 0.0
    %242 = vmatprep.subr.mxu0 0.0
    %243 = vmatpush2.msra.mxu0 0.0
    %244 = vmatprep.subr.mxu0 0.0
    %245 = vmatpush2.msra.mxu0 0.0
    %246 = vmatprep.subr.mxu0 0.0
    %247 = vmatpush2.msra.mxu0 0.0
    %248 = vmatprep.subr.mxu0 0.0
    %249 = vmatpush2.msra.mxu0 0.0
    %250 = vmatprep.subr.mxu0 0.0
    %251 = vmatpush2.msra.mxu0 0.0
    %252 = vmatprep.subr.mxu0 0.0
    %253 = vmatpush2.msra.mxu0 0.0
    %254 = vmatprep.subr.mxu0 0.0
    %255 = vmatpush2.msra.mxu0 0.0
    %256 = vmatprep.subr.mxu0 0.0
    %257 = vmatpush2.msra.mxu0 0.0
    %258 = vmatprep.mubr.f32.mxu0 0.0
    %259 = vmatmul.mubr.f32.gmra.mxu0 %v189
    %v260 = vpop.f32.mrf.mxu0
    %v261 = vadd.f32 0.0, %v260
    %v262 = vpop.f32.mrf.mxu0
    %263 = vmatprep.mubr.f32.mxu0 0.0
    %264 = vmatmul.mubr.f32.gmra.mxu0 %v192
    %v265 = vpop.f32.mrf.mxu0
    %v266 = vadd.f32 0.0, %v265
    %v267 = vpop.f32.mrf.mxu0
    %268 = vdwg.mxu0
    %s269 = sld [smem:[#allocation2]]
    %v270 = vstv %s269
    %v271 = vmul.f32 %v270, %v261
    %v272 = vmul.f32 %v270, %v266
    %v274 = vsel %vm187, %v271, 0
    %276 = vmatprep.subr.mxu0 0.0
    %277 = vmatpush1.msra.mxu0 0.0
    %278 = vmatprep.subr.mxu0 0.0
    %279 = vmatpush1.msra.mxu0 0.0
    %280 = vmatprep.subr.mxu0 0.0
    %281 = vmatpush1.msra.mxu0 0.0
    %282 = vmatprep.subr.mxu0 0.0
    %283 = vmatpush1.msra.mxu0 0.0
    %284 = vmatprep.subr.mxu0 0.0
    %285 = vmatpush1.msra.mxu0 0.0
    %286 = vmatprep.subr.mxu0 0.0
    %287 = vmatpush1.msra.mxu0 0.0
    %288 = vmatprep.subr.mxu0 0.0
    %289 = vmatpush1.msra.mxu0 0.0
    %290 = vmatprep.subr.mxu0 0.0
    %291 = vmatpush1.msra.mxu0 0.0
    %292 = vmatprep.subr.mxu0 0.0
    %293 = vmatpush1.msra.mxu0 0.0
    %294 = vmatprep.subr.mxu0 0.0
    %295 = vmatpush1.msra.mxu0 0.0
    %296 = vmatprep.subr.mxu0 0.0
    %297 = vmatpush1.msra.mxu0 0.0
    %298 = vmatprep.subr.mxu0 0.0
    %299 = vmatpush1.msra.mxu0 0.0
    %300 = vmatprep.subr.mxu0 0.0
    %301 = vmatpush1.msra.mxu0 0.0
    %302 = vmatprep.subr.mxu0 0.0
    %303 = vmatpush1.msra.mxu0 0.0
    %304 = vmatprep.subr.mxu0 0.0
    %305 = vmatpush1.msra.mxu0 0.0
    %306 = vmatprep.subr.mxu0 %v43
    %307 = vmatpush1.msra.mxu0 %v42
    %308 = vmatprep.subr.mxu0 0.0
    %309 = vmatpush2.msra.mxu0 0.0
    %310 = vmatprep.subr.mxu0 0.0
    %311 = vmatpush2.msra.mxu0 0.0
    %312 = vmatprep.subr.mxu0 0.0
    %313 = vmatpush2.msra.mxu0 0.0
    %314 = vmatprep.subr.mxu0 0.0
    %315 = vmatpush2.msra.mxu0 0.0
    %316 = vmatprep.subr.mxu0 0.0
    %317 = vmatpush2.msra.mxu0 0.0
    %318 = vmatprep.subr.mxu0 0.0
    %319 = vmatpush2.msra.mxu0 0.0
    %320 = vmatprep.subr.mxu0 0.0
    %321 = vmatpush2.msra.mxu0 0.0
    %322 = vmatprep.subr.mxu0 0.0
    %323 = vmatpush2.msra.mxu0 0.0
    %324 = vmatprep.subr.mxu0 0.0
    %325 = vmatpush2.msra.mxu0 0.0
    %326 = vmatprep.subr.mxu0 0.0
    %327 = vmatpush2.msra.mxu0 0.0
    %328 = vmatprep.subr.mxu0 0.0
    %329 = vmatpush2.msra.mxu0 0.0
    %330 = vmatprep.subr.mxu0 0.0
    %331 = vmatpush2.msra.mxu0 0.0
    %332 = vmatprep.subr.mxu0 0.0
    %333 = vmatpush2.msra.mxu0 0.0
    %334 = vmatprep.subr.mxu0 0.0
    %335 = vmatpush2.msra.mxu0 0.0
    %336 = vmatprep.subr.mxu0 0.0
    %337 = vmatpush2.msra.mxu0 0.0
    %338 = vmatprep.subr.mxu0 0.0
    %339 = vmatpush2.msra.mxu0 0.0
    %340 = vmatprep.mubr.f32.mxu0 0.0
    %341 = vmatmul.mubr.f32.gmra.mxu0 %v274
    %v342 = vpop.f32.mrf.mxu0
    %v343 = vadd.f32 %v42, %v342
    %v344 = vpop.f32.mrf.mxu0
    %v345 = vadd.f32 %v43, %v344
    %346 = vdwg.mxu0
    %v348 = vsel %vm187, %v272, 0
    %350 = vmatprep.subr.mxu0 0.0
    %351 = vmatpush1.msra.mxu0 0.0
    %352 = vmatprep.subr.mxu0 0.0
    %353 = vmatpush1.msra.mxu0 0.0
    %354 = vmatprep.subr.mxu0 0.0
    %355 = vmatpush1.msra.mxu0 0.0
    %356 = vmatprep.subr.mxu0 0.0
    %357 = vmatpush1.msra.mxu0 0.0
    %358 = vmatprep.subr.mxu0 0.0
    %359 = vmatpush1.msra.mxu0 0.0
    %360 = vmatprep.subr.mxu0 0.0
    %361 = vmatpush1.msra.mxu0 0.0
    %362 = vmatprep.subr.mxu0 0.0
    %363 = vmatpush1.msra.mxu0 0.0
    %364 = vmatprep.subr.mxu0 0.0
    %365 = vmatpush1.msra.mxu0 0.0
    %366 = vmatprep.subr.mxu0 0.0
    %367 = vmatpush1.msra.mxu0 0.0
    %368 = vmatprep.subr.mxu0 0.0
    %369 = vmatpush1.msra.mxu0 0.0
    %370 = vmatprep.subr.mxu0 0.0
    %371 = vmatpush1.msra.mxu0 0.0
    %372 = vmatprep.subr.mxu0 0.0
    %373 = vmatpush1.msra.mxu0 0.0
    %374 = vmatprep.subr.mxu0 0.0
    %375 = vmatpush1.msra.mxu0 0.0
    %376 = vmatprep.subr.mxu0 0.0
    %377 = vmatpush1.msra.mxu0 0.0
    %378 = vmatprep.subr.mxu0 0.0
    %379 = vmatpush1.msra.mxu0 0.0
    %380 = vmatprep.subr.mxu0 %v45
    %381 = vmatpush1.msra.mxu0 %v44
    %382 = vmatprep.subr.mxu0 0.0
    %383 = vmatpush2.msra.mxu0 0.0
    %384 = vmatprep.subr.mxu0 0.0
    %385 = vmatpush2.msra.mxu0 0.0
    %386 = vmatprep.subr.mxu0 0.0
    %387 = vmatpush2.msra.mxu0 0.0
    %388 = vmatprep.subr.mxu0 0.0
    %389 = vmatpush2.msra.mxu0 0.0
    %390 = vmatprep.subr.mxu0 0.0
    %391 = vmatpush2.msra.mxu0 0.0
    %392 = vmatprep.subr.mxu0 0.0
    %393 = vmatpush2.msra.mxu0 0.0
    %394 = vmatprep.subr.mxu0 0.0
    %395 = vmatpush2.msra.mxu0 0.0
    %396 = vmatprep.subr.mxu0 0.0
    %397 = vmatpush2.msra.mxu0 0.0
    %398 = vmatprep.subr.mxu0 0.0
    %399 = vmatpush2.msra.mxu0 0.0
    %400 = vmatprep.subr.mxu0 0.0
    %401 = vmatpush2.msra.mxu0 0.0
    %402 = vmatprep.subr.mxu0 0.0
    %403 = vmatpush2.msra.mxu0 0.0
    %404 = vmatprep.subr.mxu0 0.0
    %405 = vmatpush2.msra.mxu0 0.0
    %406 = vmatprep.subr.mxu0 0.0
    %407 = vmatpush2.msra.mxu0 0.0
    %408 = vmatprep.subr.mxu0 0.0
    %409 = vmatpush2.msra.mxu0 0.0
    %410 = vmatprep.subr.mxu0 0.0
    %411 = vmatpush2.msra.mxu0 0.0
    %412 = vmatprep.subr.mxu0 0.0
    %413 = vmatpush2.msra.mxu0 0.0
    %414 = vmatprep.mubr.f32.mxu0 0.0
    %415 = vmatmul.mubr.f32.gmra.mxu0 %v348
    %v416 = vpop.f32.mrf.mxu0
    %v417 = vadd.f32 %v44, %v416
    %v418 = vpop.f32.mrf.mxu0
    %v419 = vadd.f32 %v45, %v418
    %420 = vdwg.mxu0
    %421 = vst [vmem:[#allocation8] sm:$0xff] %v343
    %422 = vst [vmem:[#allocation8 + $0x8] sm:$0xff] %v345
    %423 = vst [vmem:[#allocation8 + $0x10] sm:$0xff] %v417
    %424 = vst [vmem:[#allocation8 + $0x18] sm:$0xff] %v419
    // Predicated region
    $region22: #{tpu_custom_call.1} parent=1 // pred_check
      _
    $region23: #{tpu_custom_call.1} parent=1 // pred_check_branch
      %426 = sbr.rel (0) target = $region25
    $region24: #{tpu_custom_call.1} parent=1 // pred_region
      %s428 = ssub.s32 512, 512
      %429 = vsyncadd [#allocation5], %s428
      %s430 = sshll.u32 [#allocation8], 4
      %s431 = int_to_ptr.vmem [resolvable:$true] %s430
      %436 = dma.vmem_to_hbm [thread:$0]  %s431, 512, %s3, [#allocation5], 256, 256, 16
    $region25: #{tpu_custom_call.1} parent=1 // pred_fallthru
      _
    // Predicated region
    $region26: #{tpu_custom_call.1} parent=1 // pred_check
      _
    $region27: #{tpu_custom_call.1} parent=1 // pred_check_branch
      %438 = sbr.rel (0) target = $region29
    $region28: #{tpu_custom_call.1} parent=1 // pred_region
      %439 = dma.done [#allocation5], 512
    $region29: #{tpu_custom_call.1} parent=1 // pred_fallthru
      _
    %440 = vsyncpa [#allocation4], 1
    %441 = vsyncpa [#allocation7], 1
    %442 = vsyncpa [#allocation5], 1

</llo_original>
